<compile_context>
chip_gen: v6e
topology: v6e:2x2x1
jax: 0.10.0
libtpu: 0.0.40
codegen_flags: <defaults>
</compile_context>

<pallas_src>
import functools

import jax
import jax.numpy as jnp
from jax.experimental import pallas as pl
from jax.experimental.pallas import tpu as pltpu


def _mam_kernel(x_ref, w_ref, b_ref, p_ref, o_ref):
    """x_ref/o_ref: (1, C, TS); w_ref: (C, C); b_ref: (C, 1); p_ref: (TS, TS)."""
    x = x_ref[0]                                    # (C, TS) f32
    w = w_ref[...]                                  # (C_out, C_in)
    b = b_ref[...]                                  # (C, 1), broadcast over lanes

    # att_orig = sigmoid(W @ x + b)   (1x1 conv == matmul over the channel axis)
    att = jax.nn.sigmoid(
        jnp.dot(w, x, preferred_element_type=jnp.float32) + b
    )
    # att_mirror == att_orig flipped along W; realized as a permutation matmul
    # with a block-diagonal (per-W-row) exchange matrix -> exact (0/1 entries).
    att_m = jnp.dot(att, p_ref[...], preferred_element_type=jnp.float32)

    o_ref[0] = (x * att * att_m).astype(o_ref.dtype)


def _choose_tile_s(H, W, max_tile_s):
    """Largest spatial tile that (a) is a whole number of W-rows, (b) divides
    H*W evenly, and (c) is a multiple of 128 (lane-dense) or the full extent."""
    S = H * W
    best = None
    for rows in range(1, H + 1):
        if H % rows:
            continue
        ts = rows * W
        if ts > max_tile_s:
            continue
        if ts % 128 == 0 or ts == S:
            if best is None or ts > best:
                best = ts
    # TODO(synk): if no 128-multiple, row-aligned tile <= max_tile_s exists this
    # falls back to the full spatial extent (perm matrix grows as S^2); very
    # large awkwardly-shaped maps would need a masked ragged-tile path.
    return best if best is not None else S


@functools.partial(jax.jit, static_argnames=("max_tile_s",))
def mam_attention(x_nchw, weight, bias, *, max_tile_s=512):
    """MAMAttention forward.

    Args:
      x_nchw: (B, C, H, W) float32 input (PyTorch NCHW convention).
      weight: (C_out, C_in) float32 -- squeezed 1x1 conv weight.
      bias:   (C_out,) float32.

    Returns:
      (B, C, H, W) float32 output, matching the PyTorch module.
    """
    B, C, H, W = x_nchw.shape
    S = H * W
    ts = _choose_tile_s(H, W, max_tile_s)
    n_s = S // ts

    x_bcs = x_nchw.astype(jnp.float32).reshape(B, C, S)    # free view, no copy
    w_mat = weight.astype(jnp.float32)                      # (C_out, C_in)
    b_col = bias.reshape(C, 1).astype(jnp.float32)

    # Block-diagonal width-reversal permutation: perm[s, t] = 1 iff s == m(t),
    # m(t) = (t // W) * W + (W - 1 - t % W)   (flip within each W-row).
    t_idx = jnp.arange(ts)
    m_idx = (t_idx // W) * W + (W - 1 - t_idx % W)
    perm = (t_idx[:, None] == m_idx[None, :]).astype(jnp.float32)

    out = pl.pallas_call(
        _mam_kernel,
        out_shape=jax.ShapeDtypeStruct((B, C, S), jnp.float32),
        grid_spec=pltpu.PrefetchScalarGridSpec(
            num_scalar_prefetch=0,
            grid=(B, n_s),
            in_specs=[
                pl.BlockSpec((1, C, ts), lambda b, s: (b, 0, s)),   # x tile
                pl.BlockSpec((C, C), lambda b, s: (0, 0)),          # conv weight
                pl.BlockSpec((C, 1), lambda b, s: (0, 0)),          # conv bias
                pl.BlockSpec((ts, ts), lambda b, s: (0, 0)),        # flip perm
            ],
            out_specs=pl.BlockSpec((1, C, ts), lambda b, s: (b, 0, s)),
        ),
        compiler_params=pltpu.CompilerParams(
            dimension_semantics=("parallel", "parallel"),
        ),
    )(x_bcs, w_mat, b_col, perm)

    return out.reshape(B, C, H, W)


def _reference(x_nchw, weight, bias):
    """Pure-JAX reference mirroring the PyTorch forward."""
    xm = jnp.flip(x_nchw, axis=-1)

    def conv1x1(z):
        y = jnp.einsum("oc,bchw->bohw", weight, z)
        return y + bias[None, :, None, None]

    att_o = jax.nn.sigmoid(conv1x1(x_nchw))
    att_m = jax.nn.sigmoid(conv1x1(xm))
    return x_nchw * att_o * att_m


if __name__ == "__main__":
    B, C, H, W = 2, 4, 16, 16

    key = jax.random.PRNGKey(0)
    kx, kw, kb = jax.random.split(key, 3)

    x = jax.random.normal(kx, (B, C, H, W), dtype=jnp.float32)

    # Deterministic parameter init (mimics PyTorch's uniform(-1/sqrt(fan_in), +)).
    fan_in = C  # 1x1 conv: fan_in = in_channels * 1 * 1
    bound = 1.0 / (fan_in ** 0.5)
    weight = jax.random.uniform(kw, (C, C), minval=-bound, maxval=bound,
                                dtype=jnp.float32)
    bias = jax.random.uniform(kb, (C,), minval=-bound, maxval=bound,
                              dtype=jnp.float32)

    out = jax.block_until_ready(mam_attention(x, weight, bias))

    ref = _reference(x, weight, bias)
    assert out.shape == (B, C, H, W)
    assert jnp.allclose(out, ref, atol=1e-5, rtol=1e-5), "mismatch vs reference"

    print("KERNEL_OK")
</pallas_src>

<mosaic_0001>
module attributes {stable_mosaic.version = 11 : i64} {
  func.func @_mam_kernel(%arg0: i32, %arg1: i32, %arg2: memref<1x4x256xf32, #tpu.memory_space<vmem>>, %arg3: memref<4x4xf32, #tpu.memory_space<vmem>>, %arg4: memref<4x1xf32, #tpu.memory_space<vmem>>, %arg5: memref<256x256xf32, #tpu.memory_space<vmem>>, %arg6: memref<1x4x256xf32, #tpu.memory_space<vmem>>) attributes {dimension_semantics = [#tpu.dimension_semantics<parallel>, #tpu.dimension_semantics<parallel>], iteration_bounds = array<i64: 2, 1>, scalar_prefetch = 0 : i64, scratch_operands = 0 : i64, tpu.core_type = #tpu.core_type<tc>, window_params = [{transform_indices = @transform_0, window_bounds = array<i64: 1, 4, 256>}, {pipeline_mode = #tpu.pipeline_mode<synchronous>, transform_indices = @transform_1, window_bounds = array<i64: 4, 4>}, {pipeline_mode = #tpu.pipeline_mode<synchronous>, transform_indices = @transform_2, window_bounds = array<i64: 4, 1>}, {pipeline_mode = #tpu.pipeline_mode<synchronous>, transform_indices = @transform_3, window_bounds = array<i64: 256, 256>}, {transform_indices = @transform_4, window_bounds = array<i64: 1, 4, 256>}]} {
    %c0 = arith.constant 0 : index
    %c0_0 = arith.constant 0 : index
    %c0_1 = arith.constant 0 : index
    %0 = vector.load %arg2[%c0, %c0_0, %c0_1] : memref<1x4x256xf32, #tpu.memory_space<vmem>>, vector<1x4x256xf32>
    %1 = vector.shape_cast %0 : vector<1x4x256xf32> to vector<4x256xf32>
    %c0_2 = arith.constant 0 : index
    %c0_3 = arith.constant 0 : index
    %2 = vector.load %arg3[%c0_2, %c0_3] : memref<4x4xf32, #tpu.memory_space<vmem>>, vector<4x4xf32>
    %c0_4 = arith.constant 0 : index
    %c0_5 = arith.constant 0 : index
    %3 = vector.load %arg4[%c0_4, %c0_5] : memref<4x1xf32, #tpu.memory_space<vmem>>, vector<4x1xf32>
    %cst = arith.constant dense<0.000000e+00> : vector<4x256xf32>
    %4 = tpu.matmul %2, %1, %cst {dimension_numbers = #tpu.dot_dimension_numbers<[1], [0], [0], [1], [0, 0, 1, 1], [], []>} : vector<4x4xf32>, vector<4x256xf32>, vector<4x256xf32> -> vector<4x256xf32>
    %5 = vector.broadcast %3 : vector<4x1xf32> to vector<4x256xf32>
    %6 = arith.addf %4, %5 : vector<4x256xf32>
    %7 = arith.negf %6 : vector<4x256xf32>
    %8 = math.exp %7 : vector<4x256xf32>
    %cst_6 = arith.constant 1.000000e+00 : f32
    %9 = vector.broadcast %cst_6 : f32 to vector<4x256xf32>
    %10 = arith.addf %9, %8 : vector<4x256xf32>
    %11 = arith.divf %9, %10 : vector<4x256xf32>
    %c0_7 = arith.constant 0 : index
    %c0_8 = arith.constant 0 : index
    %12 = vector.load %arg5[%c0_7, %c0_8] : memref<256x256xf32, #tpu.memory_space<vmem>>, vector<256x256xf32>
    %cst_9 = arith.constant dense<0.000000e+00> : vector<4x256xf32>
    %13 = tpu.matmul %11, %12, %cst_9 {dimension_numbers = #tpu.dot_dimension_numbers<[1], [0], [0], [1], [0, 0, 1, 1], [], []>} : vector<4x256xf32>, vector<256x256xf32>, vector<4x256xf32> -> vector<4x256xf32>
    %14 = arith.mulf %1, %11 : vector<4x256xf32>
    %15 = arith.mulf %14, %13 : vector<4x256xf32>
    %c0_10 = arith.constant 0 : index
    %c0_11 = arith.constant 0 : index
    %c0_12 = arith.constant 0 : index
    %16 = vector.load %arg6[%c0_10, %c0_11, %c0_12] : memref<1x4x256xf32, #tpu.memory_space<vmem>>, vector<1x4x256xf32>
    %17 = vector.shape_cast %16 : vector<1x4x256xf32> to vector<4x256xf32>
    %18 = vector.shape_cast %15 : vector<4x256xf32> to vector<1x4x256xf32>
    tpu.vector_store %arg6[%c0_10, %c0_11, %c0_12], %18 {strides = array<i32>} : memref<1x4x256xf32, #tpu.memory_space<vmem>>, vector<1x4x256xf32>,
    return
  }
  func.func @transform_0(%arg0: i32, %arg1: i32) -> (i32, i32, i32) {
    %c0_i32 = arith.constant 0 : i32
    %c0_i32_0 = arith.constant 0 : i32
    return %arg0, %c0_i32, %arg1 : i32, i32, i32
  }
  func.func @transform_1(%arg0: i32, %arg1: i32) -> (i32, i32) {
    %c0_i32 = arith.constant 0 : i32
    %c0_i32_0 = arith.constant 0 : i32
    %c0_i32_1 = arith.constant 0 : i32
    return %c0_i32, %c0_i32_0 : i32, i32
  }
  func.func @transform_2(%arg0: i32, %arg1: i32) -> (i32, i32) {
    %c0_i32 = arith.constant 0 : i32
    %c0_i32_0 = arith.constant 0 : i32
    %c0_i32_1 = arith.constant 0 : i32
    return %c0_i32, %c0_i32_0 : i32, i32
  }
  func.func @transform_3(%arg0: i32, %arg1: i32) -> (i32, i32) {
    %c0_i32 = arith.constant 0 : i32
    %c0_i32_0 = arith.constant 0 : i32
    %c0_i32_1 = arith.constant 0 : i32
    return %c0_i32, %c0_i32_0 : i32, i32
  }
  func.func @transform_4(%arg0: i32, %arg1: i32) -> (i32, i32, i32) {
    %c0_i32 = arith.constant 0 : i32
    %c0_i32_0 = arith.constant 0 : i32
    return %arg0, %c0_i32, %arg1 : i32, i32, i32
  }
}

</mosaic_0001>

<llo_original>
// kernel: mam_attention.1
$region0: #{mam_attention.1}
  #allocation0 [shape = 'u32[]', space=smem, size = 0x4, offset = 0x4, fixed_abs, tag = 'smem constant byte address 0x4 - core index']
  #allocation1 [shape = 'u32[144,128]{1,0:T(1,128)}', space=vmem, size = 0x12000, scoped, tag = 'internal scratch']
  %s0 = inlined_call_operand.vmem [shape: f32[2,4,256], index: 0, kind: input, shape index: {}]
  %s1 = inlined_call_operand.vmem [shape: f32[4,4], index: 1, kind: input, shape index: {}]
  %s2 = inlined_call_operand.vmem [shape: f32[4,1], index: 2, kind: input, shape index: {}]
  %s3 = inlined_call_operand.vmem [shape: f32[256,256], index: 3, kind: input, shape index: {}]
  %s4 = inlined_call_operand.vmem [shape: f32[2,4,256], index: 4, kind: output, shape index: {}]
  %s5 = sld [smem:[#allocation0]]
  $region49: #{mam_attention.1} parent=0
    _
  %s7 = ssub.s32 1, %s5
  %s8 = scalar_select 0, %s7, %s5
  loop: start=0, step=1, limit=4
  $region2: #{mam_attention.1} parent=0 // loop_pre_header
    _
  $region3: #{mam_attention.1} parent=0 // loop_header
    %s10 = sphi 0, %s14
    %p11 = scmp.ge.s32.totalorder %s10, 4
    %s17 = sphi 0, %s29
    %s18 = sphi 0, %s25
    %s19 = sphi 0, %s17
    %s20 = sphi 0, %s18
    %s21 = sphi 0, %s19
    %s22 = sphi 0, %s20
    %s34 = sphi 0, %s36
    %s37 = sphi 0, %s34
    %s38 = sphi 0, %s37
    %s54 = sphi 0, %s38
    %s58 = sphi 0, %s58
    %s60 = sphi 0, %s58
    %s61 = sphi 0, %s60
    %s75 = sphi 0, %s61
    %s79 = sphi 0, %s79
    %s81 = sphi 0, %s79
    %s82 = sphi 0, %s81
    %s96 = sphi 0, %s82
    %s100 = sphi 0, %s100
    %s102 = sphi 0, %s100
    %s103 = sphi 0, %s102
    %s117 = sphi 0, %s103
    %s125 = sphi 0, %s127
    %s128 = sphi 0, %s125
    %s129 = sphi 0, %s128
    %s145 = sphi 0, %s129
  $region4: #{mam_attention.1} parent=0 // loop_header_branch
    %13 = sbr.rel (%p11) target = $region8
  $region5: #{mam_attention.1} parent=0 // loop_body
    %s15 = ssub.s32 %s10, 1
    %s16 = ssub.s32 %s10, 2
    %s23 = sadd.s32 1, %s18
    %p24 = scmp.ge.s32.totalorder %s23, 1
    %s25 = scalar_select %p24, 0, %s23
    %s26 = sadd.s32 1, %s17
    %s27 = scalar_select %p24, %s26, %s17
    %p28 = scmp.ge.s32.totalorder %s27, 2
    %s29 = scalar_select %p28, 0, %s27
    %s30 = ssub.s32 %s17, %s29
    %s31 = ssub.s32 %s18, %s25
    %s32 = sor.u32 %s30, %s31
    %p33 = scmp.eq.s32.totalorder %s32, 0
    %s35 = sadd.s32 %s34, 1
    %s36 = scalar_select %p33, %s34, %s35
    %p39 = pneg %p33
    %p40 = scmp.eq.s32.totalorder %s10, 1
    %p41 = por %p39, %p40
    %p42 = scmp.ne.s32.totalorder %s34, %s37
    %p43 = scmp.eq.s32.totalorder %s10, 0
    %p44 = por %p42, %p43
    %p45 = scmp.ne.s32.totalorder %s34, %s37
    %p46 = scmp.eq.s32.totalorder %s15, 1
    %p47 = por %p45, %p46
    %p48 = scmp.ne.s32.totalorder %s37, %s38
    %p49 = scmp.eq.s32.totalorder %s15, 0
    %p50 = por %p48, %p49
    %p51 = scmp.ne.s32.totalorder %s37, %s38
    %p52 = scmp.eq.s32.totalorder %s16, 1
    %p53 = por %p51, %p52
    %p55 = scmp.ne.s32.totalorder %s38, %s54
    %p56 = scmp.eq.s32.totalorder %s16, 0
    %p57 = por %p55, %p56
    %s59 = sadd.s32 %s58, 1
    %p62 = scmp.eq.s32.totalorder %s10, 1
    %p63 = scmp.ne.s32.totalorder %s58, %s60
    %p64 = scmp.eq.s32.totalorder %s10, 0
    %p65 = por %p63, %p64
    %p66 = scmp.ne.s32.totalorder %s58, %s60
    %p67 = scmp.eq.s32.totalorder %s15, 1
    %p68 = por %p66, %p67
    %p69 = scmp.ne.s32.totalorder %s60, %s61
    %p70 = scmp.eq.s32.totalorder %s15, 0
    %p71 = por %p69, %p70
    %p72 = scmp.ne.s32.totalorder %s60, %s61
    %p73 = scmp.eq.s32.totalorder %s16, 1
    %p74 = por %p72, %p73
    %p76 = scmp.ne.s32.totalorder %s61, %s75
    %p77 = scmp.eq.s32.totalorder %s16, 0
    %p78 = por %p76, %p77
    %s80 = sadd.s32 %s79, 1
    %p83 = scmp.eq.s32.totalorder %s10, 1
    %p84 = scmp.ne.s32.totalorder %s79, %s81
    %p85 = scmp.eq.s32.totalorder %s10, 0
    %p86 = por %p84, %p85
    %p87 = scmp.ne.s32.totalorder %s79, %s81
    %p88 = scmp.eq.s32.totalorder %s15, 1
    %p89 = por %p87, %p88
    %p90 = scmp.ne.s32.totalorder %s81, %s82
    %p91 = scmp.eq.s32.totalorder %s15, 0
    %p92 = por %p90, %p91
    %p93 = scmp.ne.s32.totalorder %s81, %s82
    %p94 = scmp.eq.s32.totalorder %s16, 1
    %p95 = por %p93, %p94
    %p97 = scmp.ne.s32.totalorder %s82, %s96
    %p98 = scmp.eq.s32.totalorder %s16, 0
    %p99 = por %p97, %p98
    %s101 = sadd.s32 %s100, 1
    %p104 = scmp.eq.s32.totalorder %s10, 1
    %p105 = scmp.ne.s32.totalorder %s100, %s102
    %p106 = scmp.eq.s32.totalorder %s10, 0
    %p107 = por %p105, %p106
    %p108 = scmp.ne.s32.totalorder %s100, %s102
    %p109 = scmp.eq.s32.totalorder %s15, 1
    %p110 = por %p108, %p109
    %p111 = scmp.ne.s32.totalorder %s102, %s103
    %p112 = scmp.eq.s32.totalorder %s15, 0
    %p113 = por %p111, %p112
    %p114 = scmp.ne.s32.totalorder %s102, %s103
    %p115 = scmp.eq.s32.totalorder %s16, 1
    %p116 = por %p114, %p115
    %p118 = scmp.ne.s32.totalorder %s103, %s117
    %p119 = scmp.eq.s32.totalorder %s16, 0
    %p120 = por %p118, %p119
    %s121 = ssub.s32 %s17, %s29
    %s122 = ssub.s32 %s18, %s25
    %s123 = sor.u32 %s121, %s122
    %p124 = scmp.eq.s32.totalorder %s123, 0
    %s126 = sadd.s32 %s125, 1
    %s127 = scalar_select %p124, %s125, %s126
    %p130 = pneg %p124
    %p131 = scmp.eq.s32.totalorder %s10, 1
    %p132 = por %p130, %p131
    %p133 = scmp.ne.s32.totalorder %s125, %s128
    %p134 = scmp.eq.s32.totalorder %s10, 0
    %p135 = por %p133, %p134
    %p136 = scmp.ne.s32.totalorder %s125, %s128
    %p137 = scmp.eq.s32.totalorder %s15, 1
    %p138 = por %p136, %p137
    %p139 = scmp.ne.s32.totalorder %s128, %s129
    %p140 = scmp.eq.s32.totalorder %s15, 0
    %p141 = por %p139, %p140
    %p142 = scmp.ne.s32.totalorder %s128, %s129
    %p143 = scmp.eq.s32.totalorder %s16, 1
    %p144 = por %p142, %p143
    %p146 = scmp.ne.s32.totalorder %s129, %s145
    %p147 = scmp.eq.s32.totalorder %s16, 0
    %p148 = por %p146, %p147
    %p149 = scmp.le.s32.totalorder 1, %s10
    %p150 = scmp.lt.s32.totalorder %s10, 3
    %p151 = pnand %p149, %p150
    %p152 = pneg %p151
    // Predicated region
    $region9: #{mam_attention.1} parent=5 // pred_check
      _
    $region10: #{mam_attention.1} parent=5 // pred_check_branch
      %154 = sbr.rel (%p151) target = $region12
    $region11: #{mam_attention.1} parent=5 // pred_region
      %s155 = ssub.s32 %s10, 1
      // Predicated region
      $region13: #{mam_attention.1} parent=11 // pred_check
        %p156 = pneg %p71
      $region14: #{mam_attention.1} parent=11 // pred_check_branch
        %158 = sbr.rel (%p156) target = $region16
      $region15: #{mam_attention.1} parent=11 // pred_region
        _
      $region16: #{mam_attention.1} parent=11 // pred_fallthru
        _
      // Predicated region
      $region17: #{mam_attention.1} parent=11 // pred_check
        %p159 = pneg %p92
      $region18: #{mam_attention.1} parent=11 // pred_check_branch
        %161 = sbr.rel (%p159) target = $region20
      $region19: #{mam_attention.1} parent=11 // pred_region
        _
      $region20: #{mam_attention.1} parent=11 // pred_fallthru
        _
      // Predicated region
      $region21: #{mam_attention.1} parent=11 // pred_check
        %p162 = pneg %p113
      $region22: #{mam_attention.1} parent=11 // pred_check_branch
        %164 = sbr.rel (%p162) target = $region24
      $region23: #{mam_attention.1} parent=11 // pred_region
        _
      $region24: #{mam_attention.1} parent=11 // pred_fallthru
        _
    $region12: #{mam_attention.1} parent=5 // pred_fallthru
      _
    %p165 = scmp.lt.s32.totalorder %s10, 2
    // Predicated region
    $region25: #{mam_attention.1} parent=5 // pred_check
      %p166 = pneg %p165
    $region26: #{mam_attention.1} parent=5 // pred_check_branch
      %168 = sbr.rel (%p166) target = $region28
    $region27: #{mam_attention.1} parent=5 // pred_region
      // Predicated region
      $region29: #{mam_attention.1} parent=27 // pred_check
        %p169 = pneg %p44
      $region30: #{mam_attention.1} parent=27 // pred_check_branch
        %171 = sbr.rel (%p169) target = $region32
      $region31: #{mam_attention.1} parent=27 // pred_region
        %s172 = smul.u32 2, %s18
        %p173 = scmp.lt.s32.totalorder %s17, 1
        %s174 = scalar_select %p173, %s17, 1
        %p175 = scmp.lt.s32.totalorder %s172, 1
        %s176 = scalar_select %p175, %s172, 1
        %s177 = smul.addr %s174, 2
        %s178 = sadd.s32 %s176, %s177
        %s179 = smul.addr %s178, 4
        %s180 = scalar_lea.vmem %s0, %s179
        %s181 = smul.u32 2, %s18
      $region32: #{mam_attention.1} parent=27 // pred_fallthru
        _
    $region28: #{mam_attention.1} parent=5 // pred_fallthru
      _
    %p182 = scmp.le.s32.totalorder 1, %s10
    %p183 = scmp.lt.s32.totalorder %s10, 3
    %p184 = pnand %p182, %p183
    %p185 = pneg %p184
    // Predicated region
    $region33: #{mam_attention.1} parent=5 // pred_check
      _
    $region34: #{mam_attention.1} parent=5 // pred_check_branch
      %187 = sbr.rel (%p184) target = $region36
    $region35: #{mam_attention.1} parent=5 // pred_region
      %s188 = ssub.s32 %s10, 1
      %s189 = smul.u32 2, %s20
      %p190 = scmp.lt.s32.totalorder %s19, 1
      %s191 = scalar_select %p190, %s19, 1
      %p192 = scmp.lt.s32.totalorder %s189, 1
      %s193 = scalar_select %p192, %s189, 1
      %s194 = smul.addr %s191, 2
      %s195 = sadd.s32 %s193, %s194
      %s196 = smul.addr %s195, 4
      %s197 = scalar_lea.vmem %s0, %s196
      %p198 = pneg %p50
      %p199 = pneg %p47
      %p200 = pneg %p71
      %p201 = pneg %p68
      %p202 = pneg %p92
      %p203 = pneg %p89
      %p204 = pneg %p113
      %p205 = pneg %p110
      %p206 = pneg %p141
      %p207 = pneg %p138
      %s208 = smul.u32 2, %s20
      %p209 = scmp.lt.s32.totalorder %s19, 1
      %s210 = scalar_select %p209, %s19, 1
      %p211 = scmp.lt.s32.totalorder %s208, 1
      %s212 = scalar_select %p211, %s208, 1
      %s213 = smul.addr %s210, 2
      %s214 = sadd.s32 %s212, %s213
      %s215 = smul.addr %s214, 4
      %s216 = scalar_lea.vmem %s4, %s215
      %s217 = smul.u32 2, %s20
      %p218 = scmp.lt.s32.totalorder %s19, 1
      %s219 = scalar_select %p218, %s19, 1
      %p220 = scmp.lt.s32.totalorder %s217, 1
      %s221 = scalar_select %p220, %s217, 1
      %s222 = smul.addr %s219, 2
      %s223 = sadd.s32 %s221, %s222
      %s224 = smul.addr %s223, 4
      %s225 = scalar_lea.vmem %s0, %s224
      %s226 = smul.u32 2, %s20
      %s227 = smul.u32 2, %s20
      %p228 = scmp.lt.s32.totalorder %s19, 1
      %s229 = scalar_select %p228, %s19, 1
      %p230 = scmp.lt.s32.totalorder %s227, 1
      %s231 = scalar_select %p230, %s227, 1
      %s232 = smul.addr %s229, 2
      %s233 = sadd.s32 %s231, %s232
      %s234 = smul.addr %s233, 4
      %s235 = scalar_lea.vmem %s4, %s234
      %s236 = smul.u32 2, %s20
      %v237 = vld [vmem:[%s225] sm:$0xff]
      %v238 = vld [vmem:[%s1] sm:$0xf]
      %v239 = vld [vmem:[%s2] sm:$0xf]
      %241 = vset.pattern.permute.xlu0 0
      %242 = vperm.xlu0 %241, %v239
      %v243 = vpop.permute.xlu0 %242
      %v246 = vcombine.high %v237, %v237
      %vm247 = vcmask 31744
      %v249 = vsel %vm247, %v238, 0
      %vm251 = vcmask 1043456
      %v252 = vsel %vm251, %v237, 0
      %v254 = vsel %vm251, %v246, 0
      %256 = vmatprep.subr.mxu0 0.0
      %257 = vmatpush1.msra.mxu0 0.0
      %258 = vmatprep.subr.mxu0 0.0
      %259 = vmatpush1.msra.mxu0 0.0
      %260 = vmatprep.subr.mxu0 0.0
      %261 = vmatpush1.msra.mxu0 0.0
      %262 = vmatprep.subr.mxu0 0.0
      %263 = vmatpush1.msra.mxu0 0.0
      %264 = vmatprep.subr.mxu0 0.0
      %265 = vmatpush1.msra.mxu0 0.0
      %266 = vmatprep.subr.mxu0 0.0
      %267 = vmatpush1.msra.mxu0 0.0
      %268 = vmatprep.subr.mxu0 0.0
      %269 = vmatpush1.msra.mxu0 0.0
      %270 = vmatprep.subr.mxu0 0.0
      %271 = vmatpush1.msra.mxu0 0.0
      %272 = vmatprep.subr.mxu0 0.0
      %273 = vmatpush1.msra.mxu0 0.0
      %274 = vmatprep.subr.mxu0 0.0
      %275 = vmatpush1.msra.mxu0 0.0
      %276 = vmatprep.subr.mxu0 0.0
      %277 = vmatpush1.msra.mxu0 0.0
      %278 = vmatprep.subr.mxu0 0.0
      %279 = vmatpush1.msra.mxu0 0.0
      %280 = vmatprep.subr.mxu0 0.0
      %281 = vmatpush1.msra.mxu0 0.0
      %282 = vmatprep.subr.mxu0 0.0
      %283 = vmatpush1.msra.mxu0 0.0
      %284 = vmatprep.subr.mxu0 0.0
      %285 = vmatpush1.msra.mxu0 0.0
      %286 = vmatprep.subr.mxu0 %v254
      %287 = vmatpush1.msra.mxu0 %v252
      %288 = vmatprep.subr.mxu0 0.0
      %289 = vmatpush2.msra.mxu0 0.0
      %290 = vmatprep.subr.mxu0 0.0
      %291 = vmatpush2.msra.mxu0 0.0
      %292 = vmatprep.subr.mxu0 0.0
      %293 = vmatpush2.msra.mxu0 0.0
      %294 = vmatprep.subr.mxu0 0.0
      %295 = vmatpush2.msra.mxu0 0.0
      %296 = vmatprep.subr.mxu0 0.0
      %297 = vmatpush2.msra.mxu0 0.0
      %298 = vmatprep.subr.mxu0 0.0
      %299 = vmatpush2.msra.mxu0 0.0
      %300 = vmatprep.subr.mxu0 0.0
      %301 = vmatpush2.msra.mxu0 0.0
      %302 = vmatprep.subr.mxu0 0.0
      %303 = vmatpush2.msra.mxu0 0.0
      %304 = vmatprep.subr.mxu0 0.0
      %305 = vmatpush2.msra.mxu0 0.0
      %306 = vmatprep.subr.mxu0 0.0
      %307 = vmatpush2.msra.mxu0 0.0
      %308 = vmatprep.subr.mxu0 0.0
      %309 = vmatpush2.msra.mxu0 0.0
      %310 = vmatprep.subr.mxu0 0.0
      %311 = vmatpush2.msra.mxu0 0.0
      %312 = vmatprep.subr.mxu0 0.0
      %313 = vmatpush2.msra.mxu0 0.0
      %314 = vmatprep.subr.mxu0 0.0
      %315 = vmatpush2.msra.mxu0 0.0
      %316 = vmatprep.subr.mxu0 0.0
      %317 = vmatpush2.msra.mxu0 0.0
      %318 = vmatprep.subr.mxu0 0.0
      %319 = vmatpush2.msra.mxu0 0.0
      %320 = vmatprep.mubr.f32.mxu0 0.0
      %321 = vmatmul.mubr.f32.gmra.mxu0 %v249
      %v322 = vpop.f32.mrf.mxu0
      %v323 = vadd.f32 %v243, %v322
      %v324 = vpop.f32.mrf.mxu0
      %v325 = vadd.f32 %v243, %v324
      %326 = vdwg.mxu0
      %v327 = vxor.u32 %v323, 2147483648
      %v328 = vxor.u32 %v325, 2147483648
      %v329 = vmul.f32 %v327, 1.442695
      %v330 = vpow.pop %v329
      %v331 = vmul.f32 %v328, 1.442695
      %v332 = vpow.pop %v331
      %v333 = vadd.f32 %v330, 1.0
      %v334 = vadd.f32 %v332, 1.0
      %v335 = vrcp.pop %v333
      %v336 = vmul.f32 1.0, %v335
      %v337 = vrcp.pop %v334
      %v338 = vmul.f32 1.0, %v337
      %v339 = vld [vmem:[%s3] sm:$0xff]
      %v340 = vld [vmem:[%s3 + $0x8] sm:$0xff]
      %v341 = vld [vmem:[%s3 + $0x10] sm:$0xff]
      %v342 = vld [vmem:[%s3 + $0x18] sm:$0xff]
      %v343 = vld [vmem:[%s3 + $0x20] sm:$0xff]
      %v344 = vld [vmem:[%s3 + $0x28] sm:$0xff]
      %v345 = vld [vmem:[%s3 + $0x30] sm:$0xff]
      %v346 = vld [vmem:[%s3 + $0x38] sm:$0xff]
      %v347 = vld [vmem:[%s3 + $0x40] sm:$0xff]
      %v348 = vld [vmem:[%s3 + $0x48] sm:$0xff]
      %v349 = vld [vmem:[%s3 + $0x50] sm:$0xff]
      %v350 = vld [vmem:[%s3 + $0x58] sm:$0xff]
      %v351 = vld [vmem:[%s3 + $0x60] sm:$0xff]
      %v352 = vld [vmem:[%s3 + $0x68] sm:$0xff]
      %v353 = vld [vmem:[%s3 + $0x70] sm:$0xff]
      %v354 = vld [vmem:[%s3 + $0x78] sm:$0xff]
      %v355 = vld [vmem:[%s3 + $0x80] sm:$0xff]
      %v356 = vld [vmem:[%s3 + $0x88] sm:$0xff]
      %v357 = vld [vmem:[%s3 + $0x90] sm:$0xff]
      %v358 = vld [vmem:[%s3 + $0x98] sm:$0xff]
      %v359 = vld [vmem:[%s3 + $0xa0] sm:$0xff]
      %v360 = vld [vmem:[%s3 + $0xa8] sm:$0xff]
      %v361 = vld [vmem:[%s3 + $0xb0] sm:$0xff]
      %v362 = vld [vmem:[%s3 + $0xb8] sm:$0xff]
      %v363 = vld [vmem:[%s3 + $0xc0] sm:$0xff]
      %v364 = vld [vmem:[%s3 + $0xc8] sm:$0xff]
      %v365 = vld [vmem:[%s3 + $0xd0] sm:$0xff]
      %v366 = vld [vmem:[%s3 + $0xd8] sm:$0xff]
      %v367 = vld [vmem:[%s3 + $0xe0] sm:$0xff]
      %v368 = vld [vmem:[%s3 + $0xe8] sm:$0xff]
      %v369 = vld [vmem:[%s3 + $0xf0] sm:$0xff]
      %v370 = vld [vmem:[%s3 + $0xf8] sm:$0xff]
      %v371 = vld [vmem:[%s3 + $0x100] sm:$0xff]
      %v372 = vld [vmem:[%s3 + $0x108] sm:$0xff]
      %v373 = vld [vmem:[%s3 + $0x110] sm:$0xff]
      %v374 = vld [vmem:[%s3 + $0x118] sm:$0xff]
      %v375 = vld [vmem:[%s3 + $0x120] sm:$0xff]
      %v376 = vld [vmem:[%s3 + $0x128] sm:$0xff]
      %v377 = vld [vmem:[%s3 + $0x130] sm:$0xff]
      %v378 = vld [vmem:[%s3 + $0x138] sm:$0xff]
      %v379 = vld [vmem:[%s3 + $0x140] sm:$0xff]
      %v380 = vld [vmem:[%s3 + $0x148] sm:$0xff]
      %v381 = vld [vmem:[%s3 + $0x150] sm:$0xff]
      %v382 = vld [vmem:[%s3 + $0x158] sm:$0xff]
      %v383 = vld [vmem:[%s3 + $0x160] sm:$0xff]
      %v384 = vld [vmem:[%s3 + $0x168] sm:$0xff]
      %v385 = vld [vmem:[%s3 + $0x170] sm:$0xff]
      %v386 = vld [vmem:[%s3 + $0x178] sm:$0xff]
      %v387 = vld [vmem:[%s3 + $0x180] sm:$0xff]
      %v388 = vld [vmem:[%s3 + $0x188] sm:$0xff]
      %v389 = vld [vmem:[%s3 + $0x190] sm:$0xff]
      %v390 = vld [vmem:[%s3 + $0x198] sm:$0xff]
      %v391 = vld [vmem:[%s3 + $0x1a0] sm:$0xff]
      %v392 = vld [vmem:[%s3 + $0x1a8] sm:$0xff]
      %v393 = vld [vmem:[%s3 + $0x1b0] sm:$0xff]
      %v394 = vld [vmem:[%s3 + $0x1b8] sm:$0xff]
      %v395 = vld [vmem:[%s3 + $0x1c0] sm:$0xff]
      %v396 = vld [vmem:[%s3 + $0x1c8] sm:$0xff]
      %v397 = vld [vmem:[%s3 + $0x1d0] sm:$0xff]
      %v398 = vld [vmem:[%s3 + $0x1d8] sm:$0xff]
      %v399 = vld [vmem:[%s3 + $0x1e0] sm:$0xff]
      %v400 = vld [vmem:[%s3 + $0x1e8] sm:$0xff]
      %v401 = vld [vmem:[%s3 + $0x1f0] sm:$0xff]
      %v402 = vld [vmem:[%s3 + $0x1f8] sm:$0xff]
      %403 = vmatprep.subr.mxu0 %v370
      %404 = vmatpush1.msra.mxu0 %v369
      %405 = vmatprep.subr.mxu0 %v368
      %406 = vmatpush1.msra.mxu0 %v367
      %407 = vmatprep.subr.mxu0 %v366
      %408 = vmatpush1.msra.mxu0 %v365
      %409 = vmatprep.subr.mxu0 %v364
      %410 = vmatpush1.msra.mxu0 %v363
      %411 = vmatprep.subr.mxu0 %v362
      %412 = vmatpush1.msra.mxu0 %v361
      %413 = vmatprep.subr.mxu0 %v360
      %414 = vmatpush1.msra.mxu0 %v359
      %415 = vmatprep.subr.mxu0 %v358
      %416 = vmatpush1.msra.mxu0 %v357
      %417 = vmatprep.subr.mxu0 %v356
      %418 = vmatpush1.msra.mxu0 %v355
      %419 = vmatprep.subr.mxu0 %v354
      %420 = vmatpush1.msra.mxu0 %v353
      %421 = vmatprep.subr.mxu0 %v352
      %422 = vmatpush1.msra.mxu0 %v351
      %423 = vmatprep.subr.mxu0 %v350
      %424 = vmatpush1.msra.mxu0 %v349
      %425 = vmatprep.subr.mxu0 %v348
      %426 = vmatpush1.msra.mxu0 %v347
      %427 = vmatprep.subr.mxu0 %v346
      %428 = vmatpush1.msra.mxu0 %v345
      %429 = vmatprep.subr.mxu0 %v344
      %430 = vmatpush1.msra.mxu0 %v343
      %431 = vmatprep.subr.mxu0 %v342
      %432 = vmatpush1.msra.mxu0 %v341
      %433 = vmatprep.subr.mxu0 %v340
      %434 = vmatpush1.msra.mxu0 %v339
      %435 = vmatprep.subr.mxu0 %v402
      %436 = vmatpush2.msra.mxu0 %v401
      %437 = vmatprep.subr.mxu0 %v400
      %438 = vmatpush2.msra.mxu0 %v399
      %439 = vmatprep.subr.mxu0 %v398
      %440 = vmatpush2.msra.mxu0 %v397
      %441 = vmatprep.subr.mxu0 %v396
      %442 = vmatpush2.msra.mxu0 %v395
      %443 = vmatprep.subr.mxu0 %v394
      %444 = vmatpush2.msra.mxu0 %v393
      %445 = vmatprep.subr.mxu0 %v392
      %446 = vmatpush2.msra.mxu0 %v391
      %447 = vmatprep.subr.mxu0 %v390
      %448 = vmatpush2.msra.mxu0 %v389
      %449 = vmatprep.subr.mxu0 %v388
      %450 = vmatpush2.msra.mxu0 %v387
      %451 = vmatprep.subr.mxu0 %v386
      %452 = vmatpush2.msra.mxu0 %v385
      %453 = vmatprep.subr.mxu0 %v384
      %454 = vmatpush2.msra.mxu0 %v383
      %455 = vmatprep.subr.mxu0 %v382
      %456 = vmatpush2.msra.mxu0 %v381
      %457 = vmatprep.subr.mxu0 %v380
      %458 = vmatpush2.msra.mxu0 %v379
      %459 = vmatprep.subr.mxu0 %v378
      %460 = vmatpush2.msra.mxu0 %v377
      %461 = vmatprep.subr.mxu0 %v376
      %462 = vmatpush2.msra.mxu0 %v375
      %463 = vmatprep.subr.mxu0 %v374
      %464 = vmatpush2.msra.mxu0 %v373
      %465 = vmatprep.subr.mxu0 %v372
      %466 = vmatpush2.msra.mxu0 %v371
      %467 = vmatprep.mubr.f32.mxu0 %v338
      %468 = vmatmul.mubr.f32.gmra.mxu0 %v336
      %v469 = vpop.f32.mrf.mxu0
      %v470 = vadd.f32 0.0, %v469
      %v471 = vpop.f32.mrf.mxu0
      %v472 = vadd.f32 0.0, %v471
      %473 = vdwg.mxu0
      %v476 = vcombine.low %v336, %v338
      %v478 = vmul.f32 %v237, %v476
      %v481 = vcombine.low %v470, %v472
      %v483 = vmul.f32 %v478, %v481
      %484 = vst [vmem:[%s235] sm:$0xff] %v483
      %s485 = smul.u32 2, %s20
      %p486 = scmp.lt.s32.totalorder %s19, 1
      %s487 = scalar_select %p486, %s19, 1
      %p488 = scmp.lt.s32.totalorder %s485, 1
      %s489 = scalar_select %p488, %s485, 1
      %s490 = smul.addr %s487, 2
      %s491 = sadd.s32 %s489, %s490
      %s492 = smul.addr %s491, 4
      %s493 = scalar_lea.vmem %s4, %s492
      // Predicated region
      $region37: #{mam_attention.1} parent=35 // pred_check
        %p494 = pneg %p138
      $region38: #{mam_attention.1} parent=35 // pred_check_branch
        %496 = sbr.rel (%p494) target = $region40
      $region39: #{mam_attention.1} parent=35 // pred_region
        %s497 = smul.u32 2, %s20
      $region40: #{mam_attention.1} parent=35 // pred_fallthru
        _
    $region36: #{mam_attention.1} parent=5 // pred_fallthru
      _
    %p498 = scmp.le.s32.totalorder 2, %s10
    // Predicated region
    $region41: #{mam_attention.1} parent=5 // pred_check
      %p499 = pneg %p498
    $region42: #{mam_attention.1} parent=5 // pred_check_branch
      %501 = sbr.rel (%p499) target = $region44
    $region43: #{mam_attention.1} parent=5 // pred_region
      %s502 = ssub.s32 %s10, 2
      // Predicated region
      $region45: #{mam_attention.1} parent=43 // pred_check
        %p503 = pneg %p144
      $region46: #{mam_attention.1} parent=43 // pred_check_branch
        %505 = sbr.rel (%p503) target = $region48
      $region47: #{mam_attention.1} parent=43 // pred_region
        %s506 = smul.u32 2, %s22
        %p507 = scmp.lt.s32.totalorder %s21, 1
        %s508 = scalar_select %p507, %s21, 1
        %p509 = scmp.lt.s32.totalorder %s506, 1
        %s510 = scalar_select %p509, %s506, 1
        %s511 = smul.addr %s508, 2
        %s512 = sadd.s32 %s510, %s511
        %s513 = smul.addr %s512, 4
        %s514 = scalar_lea.vmem %s4, %s513
      $region48: #{mam_attention.1} parent=43 // pred_fallthru
        _
    $region44: #{mam_attention.1} parent=5 // pred_fallthru
      _
  $region6: #{mam_attention.1} parent=0 // loop_footer
    %s14 = sadd.s32 1, %s10
  $region7: #{mam_attention.1} parent=0 // loop_footer_branch
    %9 = sbr.rel target = $region3
  $region8: #{mam_attention.1} parent=0 // loop_exit
    _

</llo_original>
